<compile_context>
chip_gen: v7x
topology: tpu7x:2x2x1
jax: 0.10.0
libtpu: 0.0.40
codegen_flags: <defaults>
</compile_context>

<pallas_src>
import jax
import jax.numpy as jnp
from jax.experimental import pallas as pl
from jax.experimental.pallas import tpu as pltpu

LANE = 128
ROW_ALIGN = 32                 # multiple of 8/16/32 -> no sublane-masked ld/st for f32/bf16/int8
TARGET_BLOCK_BYTES = 4 << 20   # ~4 MiB per buffer (double-buffered in+out ~= 16-20 MiB)
BL_MAX = 4096                  # lane-tile cap (multiple of 128)
XLA_BYPASS_BYTES = 1 << 20     # below this a plain XLA slice beats a kernel launch


def _round_up(x: int, m: int) -> int:
    return ((x + m - 1) // m) * m


def _crop_copy_kernel(x_ref, o_ref):
    # Identity copy.  In the full-lane-extent path the input block is wider
    # than the output block and the static slice performs the crop in VMEM;
    # in the lane-tiled path the shapes match and this is a pure copy (the
    # crop already lives in the grid / BlockSpec).
    o_ref[...] = x_ref[:, : o_ref.shape[-1]]


def _pick_row_tile(rows: int, row_bytes: int) -> int:
    """Largest row tile that (a) is a multiple of 32/8 or the full extent,
    (b) keeps one buffer near TARGET_BLOCK_BYTES, and (c) yields >=2 row
    blocks when possible so both v7x TensorCores get work."""
    fit = max(1, TARGET_BLOCK_BYTES // max(1, row_bytes))
    if rows <= fit:
        if rows >= 2 * ROW_ALIGN:
            # Whole extent would fit in one block -> split in two for 2 TCs.
            return _round_up((rows + 1) // 2, ROW_ALIGN)
        return rows                                  # full extent: always legal
    br = (fit // ROW_ALIGN) * ROW_ALIGN
    if br >= ROW_ALIGN:
        return br
    br = (fit // 8) * 8
    if br >= 8:
        return br
    # Pathologically wide rows: minimum legal block (8) or full tiny extent.
    return 8 if rows >= 8 else rows


def cropping1d(x: jax.Array, crop_right: int, *, force_pallas: bool = False) -> jax.Array:
    """Crops the last `crop_right` time steps of x with shape (N, C, L)."""
    if crop_right <= 0:
        return x

    n, c, l = x.shape
    l_out = l - crop_right
    assert l_out > 0, "crop_right must be smaller than the sequence length"

    dtype_bytes = jnp.dtype(x.dtype).itemsize
    rows = n * c

    # Small problems (the module's real shapes are a few KB): XLA slice wins.
    if not force_pallas and rows * l * dtype_bytes < XLA_BYPASS_BYTES:
        return x[:, :, :l_out]

    x2 = x.reshape(rows, l)  # free / layout-preserving for row-major inputs

    # --- Lane blocking -------------------------------------------------------
    # Path A: full-lane output block (contiguous writeback, 1 lane block).
    full_lane_ok = (l_out < LANE) or (4 * crop_right <= l)
    if full_lane_ok and (l_out >= LANE) and (8 * l * dtype_bytes > 2 * TARGET_BLOCK_BYTES):
        # Even a minimum-legal 8-row block would blow the VMEM budget -> tile lanes.
        full_lane_ok = False

    if full_lane_ok:
        bl_in, bl_out = l, l_out
    else:
        # Path B: 128-dense, balanced lane tiles (no near-empty tail block).
        n_lane_blocks = pl.cdiv(l_out, BL_MAX)
        bl = min(_round_up(pl.cdiv(l_out, n_lane_blocks), LANE),
                 _round_up(l_out, LANE))
        bl_in = bl_out = bl

    # --- Row blocking --------------------------------------------------------
    br = _pick_row_tile(rows, bl_in * dtype_bytes)

    grid = (pl.cdiv(rows, br), pl.cdiv(l_out, bl_out))

    # Double-buffered in + out footprint; raise the scoped-VMEM limit only when
    # it could exceed the smallest default (v5e: 16 MiB), capped well under
    # v7x's 64 MiB physical VMEM.
    vmem_needed = 2 * br * (bl_in + bl_out) * dtype_bytes
    compiler_kwargs = dict(dimension_semantics=("parallel", "parallel"))
    if vmem_needed > (12 << 20):
        compiler_kwargs["vmem_limit_bytes"] = int(min(48 << 20, vmem_needed + (8 << 20)))

    out2 = pl.pallas_call(
        _crop_copy_kernel,
        out_shape=jax.ShapeDtypeStruct((rows, l_out), x.dtype),
        grid=grid,
        in_specs=[pl.BlockSpec((br, bl_in), lambda i, j: (i, j))],
        out_specs=pl.BlockSpec((br, bl_out), lambda i, j: (i, j)),
        compiler_params=pltpu.CompilerParams(**compiler_kwargs),
    )(x2)

    return out2.reshape(n, c, l_out)


if __name__ == "__main__":
    key = jax.random.PRNGKey(0)

    # Primary shape matching the module's intended use: (batch, channels, time).
    batch, channels, seq = 2, 4, 16
    crop_right = 3
    x = jax.random.normal(key, (batch, channels, seq), dtype=jnp.float32)

    # Force the Pallas path so the kernel actually runs (full-lane path, L_out<128).
    y = cropping1d(x, crop_right, force_pallas=True)
    jax.block_until_ready(y)
    assert y.shape == (batch, channels, seq - crop_right)
    assert jnp.array_equal(y, x[:, :, :-crop_right])

    # Full-lane path with L_out >= 128 and a multi-row split.
    x2 = jax.random.normal(jax.random.PRNGKey(0), (2, 4, 400), dtype=jnp.float32)
    y2 = cropping1d(x2, 10, force_pallas=True)
    jax.block_until_ready(y2)
    assert y2.shape == (2, 4, 390)
    assert jnp.array_equal(y2, x2[:, :, :-10])

    # Lane-tiled path (crop is a large fraction of L): 128-dense blocks + masked tail.
    x3 = jax.random.normal(jax.random.PRNGKey(0), (4, 8, 512), dtype=jnp.float32)
    y3 = cropping1d(x3, 300, force_pallas=True)
    jax.block_until_ready(y3)
    assert y3.shape == (4, 8, 212)
    assert jnp.array_equal(y3, x3[:, :, :-300])

    # crop_right == 0 path (identity, no kernel launched).
    assert jnp.array_equal(cropping1d(x, 0), x)

    # Default (non-forced) small-problem path: plain XLA slice, same result.
    y_small = cropping1d(x, crop_right)
    jax.block_until_ready(y_small)
    assert jnp.array_equal(y_small, x[:, :, :-crop_right])

    print("KERNEL_OK")
</pallas_src>

<mosaic_0001>
module attributes {stable_mosaic.version = 11 : i64} {
  func.func @_crop_copy_kernel(%arg0: i32, %arg1: i32, %arg2: memref<8x16xf32, #tpu.memory_space<vmem>>, %arg3: memref<8x13xf32, #tpu.memory_space<vmem>>) attributes {dimension_semantics = [#tpu.dimension_semantics<parallel>, #tpu.dimension_semantics<parallel>], iteration_bounds = array<i64: 1, 1>, scalar_prefetch = 0 : i64, scratch_operands = 0 : i64, tpu.core_type = #tpu.core_type<tc>, window_params = [{transform_indices = @transform_0, window_bounds = array<i64: 8, 16>}, {transform_indices = @transform_1, window_bounds = array<i64: 8, 13>}]} {
    %c0 = arith.constant 0 : index
    %c0_0 = arith.constant 0 : index
    %0 = vector.load %arg2[%c0, %c0_0] : memref<8x16xf32, #tpu.memory_space<vmem>>, vector<8x13xf32>
    %c0_1 = arith.constant 0 : index
    %c0_2 = arith.constant 0 : index
    %1 = vector.load %arg3[%c0_1, %c0_2] : memref<8x13xf32, #tpu.memory_space<vmem>>, vector<8x13xf32>
    tpu.vector_store %arg3[%c0_1, %c0_2], %0 {strides = array<i32>} : memref<8x13xf32, #tpu.memory_space<vmem>>, vector<8x13xf32>,
    return
  }
  func.func @transform_0(%arg0: i32, %arg1: i32) -> (i32, i32) {
    %c0_i32 = arith.constant 0 : i32
    return %arg0, %arg1 : i32, i32
  }
  func.func @transform_1(%arg0: i32, %arg1: i32) -> (i32, i32) {
    %c0_i32 = arith.constant 0 : i32
    return %arg0, %arg1 : i32, i32
  }
}

</mosaic_0001>

<llo_original>
// kernel: tpu_custom_call.1
$region0: #{tpu_custom_call.1}
  #allocation0 [shape = 'u32[]', space=smem, size = 0x4, offset = 0x4, fixed_abs, tag = 'smem constant byte address 0x4 - core index']
  #allocation1 [shape = 'u32[144,128]{1,0:T(1,128)}', space=vmem, size = 0x12000, scoped, tag = 'internal scratch']
  %s0 = inlined_call_operand.hbm [shape: f32[8,16], index: 0, kind: input, shape index: {}]
  %s1 = inlined_call_operand.hbm [shape: f32[8,13], index: 1, kind: output, shape index: {}]
  %s2 = sld [smem:[#allocation0]]
  $region18: #{tpu_custom_call.1} parent=0
    _
  %s4 = ssub.s32 1, %s2
  %s5 = scalar_select 0, %s4, %s2
  $region1: #{tpu_custom_call.1} parent=0
    #allocation2 [shape = 'u8[4096]{0}', space=vmem, size = 0x1000, scoped, tag = 'input window, operand 0, single buffered']
    #allocation3 [shape = 's32[1]{0}', space=sflag, size = 0x4, scoped, tag = 'scoped memory for tpu_custom_call.1']
    #allocation4 [shape = 's32[1]{0}', space=sflag, size = 0x4, scoped, tag = 'scoped memory for tpu_custom_call.1']
    #allocation5 [shape = 'u8[4096]{0}', space=vmem, size = 0x1000, scoped, tag = 'output window, operand 0, single buffered']
    %6 = vsyncpa [#allocation3], 0
    %7 = vsyncpa [#allocation4], 0
    // Predicated region
    $region2: #{tpu_custom_call.1} parent=1 // pred_check
      _
    $region3: #{tpu_custom_call.1} parent=1 // pred_check_branch
      %9 = sbr.rel (0) target = $region5
    $region4: #{tpu_custom_call.1} parent=1 // pred_region
      %s11 = ssub.s32 128, 128
      %12 = vsyncadd [#allocation3], %s11
      %s14 = sshll.u32 [#allocation2], 4
      %s15 = int_to_ptr.vmem [resolvable:$true] %s14
      %17 = dma.hbm_to_vmem [thread:$0]  %s0, 128, %s15, [#allocation3]
    $region5: #{tpu_custom_call.1} parent=1 // pred_fallthru
      _
    // Predicated region
    $region6: #{tpu_custom_call.1} parent=1 // pred_check
      _
    $region7: #{tpu_custom_call.1} parent=1 // pred_check_branch
      %19 = sbr.rel (0) target = $region9
    $region8: #{tpu_custom_call.1} parent=1 // pred_region
      %20 = dma.done [#allocation3], 128
    $region9: #{tpu_custom_call.1} parent=1 // pred_fallthru
      _
    %v21 = vld [vmem:[#allocation2] sm:$0xff]
    %vm22 = vcmask 105472
    %23 = vst.msk [vmem:[#allocation5] sm:$0xff] %vm22, %v21
    // Predicated region
    $region10: #{tpu_custom_call.1} parent=1 // pred_check
      _
    $region11: #{tpu_custom_call.1} parent=1 // pred_check_branch
      %25 = sbr.rel (0) target = $region13
    $region12: #{tpu_custom_call.1} parent=1 // pred_region
      %s27 = ssub.s32 128, 128
      %28 = vsyncadd [#allocation4], %s27
      %s30 = sshll.u32 [#allocation5], 4
      %s31 = int_to_ptr.vmem [resolvable:$true] %s30
      %33 = dma.vmem_to_hbm [thread:$0]  %s31, 128, %s1, [#allocation4]
    $region13: #{tpu_custom_call.1} parent=1 // pred_fallthru
      _
    // Predicated region
    $region14: #{tpu_custom_call.1} parent=1 // pred_check
      _
    $region15: #{tpu_custom_call.1} parent=1 // pred_check_branch
      %35 = sbr.rel (0) target = $region17
    $region16: #{tpu_custom_call.1} parent=1 // pred_region
      %36 = dma.done [#allocation4], 128
    $region17: #{tpu_custom_call.1} parent=1 // pred_fallthru
      _
    %37 = vsyncpa [#allocation3], 1
    %38 = vsyncpa [#allocation4], 1

</llo_original>
